<compile_context>
chip_gen: v6e
topology: v6e:2x2x1
jax: 0.10.0
libtpu: 0.0.40
codegen_flags: <defaults>
</compile_context>

<pallas_src>
import jax
import jax.numpy as jnp
from jax.experimental import pallas as pl
from jax.experimental.pallas import tpu as pltpu


def _mlp_attention_kernel(key_ref, value_ref, qs_ref,
                          wk_ref, bk_ref, gamma_ref, beta_ref,
                          wa_ref, ba_ref,
                          out_ref, att_ref):
    # key_ref: (1, TB, S, K), value_ref: (1, TB, S, V), qs_ref: (1, TB, A)
    TB, S, K = key_ref.shape[1:]
    A = wk_ref.shape[-1]

    k = key_ref[0].astype(jnp.float32)     # (TB, S, K)
    v = value_ref[0].astype(jnp.float32)   # (TB, S, V)
    qs = qs_ref[0].astype(jnp.float32)     # (TB, A)

    # Key linear on the MXU: fold the batch into the sublane axis -> one
    # (TB*S, K) @ (K, A) matmul per grid step.
    score = jnp.dot(k.reshape(TB * S, K), wk_ref[...],
                    preferred_element_type=jnp.float32) + bk_ref[...]
    score = score.reshape(TB, S, A)

    # query_vec score precomputed in the wrapper; broadcast over the key-seq axis
    # (unsqueeze(1) in torch). Reductions below stay per-batch.
    score = score + qs[:, None, :]

    # LayerNorm over the attention (last) axis, eps = 1e-5.
    mean = jnp.mean(score, axis=-1, keepdims=True)
    var = jnp.mean((score - mean) ** 2, axis=-1, keepdims=True)
    score = (score - mean) * jax.lax.rsqrt(var + 1e-5)
    score = score * gamma_ref[...] + beta_ref[...]

    # leaky_relu_ (default negative_slope = 0.01).
    score = jnp.where(score >= 0, score, 0.01 * score)

    # Attention projection to a single column: VPU multiply + lane reduce
    # instead of an N=1 MXU matmul.  -> (TB, S)
    att = jnp.sum(score * wa_ref[...], axis=-1) + ba_ref[...]

    # Softmax over the key-seq axis (per batch row; lane reduce).
    att = att - jnp.max(att, axis=-1, keepdims=True)
    e = jnp.exp(att)
    att = e * pl.reciprocal(jnp.sum(e, axis=-1, keepdims=True), approx=True)

    # Weighted sum over the key-seq axis -> (TB, V).
    out = jnp.sum(att[:, :, None] * v, axis=1)

    out_ref[0] = out.astype(out_ref.dtype)    # (TB, V): sublane/lane-dense store
    att_ref[0] = att.astype(att_ref.dtype)    # (TB, S): lane-dense store


def _pick_tb(B, S, max_rows=512):
    """Largest batch-fold TB (divisor of B) with TB*S <= max_rows, preferring
    >= 2 grid steps so a parallel grid axis can be split across v7x's 2 TCs."""
    divs = [d for d in range(1, B + 1) if B % d == 0]
    cands = [d for d in divs if d * S <= max_rows] or [1]
    pref = [d for d in cands if B // d >= 2]
    return max(pref) if pref else max(cands)


def mlp_attention(key, value, query_vec, params, tb=None):
    """key: [B,S,K], value: [B,S,V], query_vec: [B,Qv]."""
    B, S, K = key.shape
    V = value.shape[-1]
    A = params["wk"].shape[-1]

    TB = tb if tb is not None else _pick_tb(B, S)
    assert B % TB == 0, "TB must divide the batch"
    G = B // TB

    # Hoist the query_vec linear out of the kernel: one well-shaped XLA GEMM.
    qv_score = (query_vec @ params["wq"] + params["bq"]).astype(jnp.float32)  # (B, A)

    # Present batch-folded views so every block's trailing dims equal the full
    # array dims (keeps BlockSpecs trivially legal for any TB).
    key_r = key.reshape(G, TB, S, K)
    value_r = value.reshape(G, TB, S, V)
    qs_r = qv_score.reshape(G, TB, A)

    # 2-D lane-major views of 1-D parameters.
    bk = params["bk"].reshape(1, A)
    gamma = params["gamma"].reshape(1, A)
    beta = params["beta"].reshape(1, A)
    wa = params["wa"].reshape(1, A)
    ba = params["ba"].reshape(1, 1)

    full2d = lambda g: (0, 0)

    out, att = pl.pallas_call(
        _mlp_attention_kernel,
        out_shape=(
            jax.ShapeDtypeStruct((G, TB, V), key.dtype),
            jax.ShapeDtypeStruct((G, TB, S), key.dtype),
        ),
        grid_spec=pltpu.PrefetchScalarGridSpec(
            num_scalar_prefetch=0,
            grid=(G,),
            in_specs=[
                pl.BlockSpec((1, TB, S, K), lambda g: (g, 0, 0, 0)),  # key slab
                pl.BlockSpec((1, TB, S, V), lambda g: (g, 0, 0, 0)),  # value slab
                pl.BlockSpec((1, TB, A), lambda g: (g, 0, 0)),        # precomputed qv score
                pl.BlockSpec((K, A), full2d),                         # Wk
                pl.BlockSpec((1, A), full2d),                         # bk
                pl.BlockSpec((1, A), full2d),                         # gamma
                pl.BlockSpec((1, A), full2d),                         # beta
                pl.BlockSpec((1, A), full2d),                         # wa (row form)
                pl.BlockSpec((1, 1), full2d),                         # ba
            ],
            out_specs=[
                pl.BlockSpec((1, TB, V), lambda g: (g, 0, 0)),        # pooled value
                pl.BlockSpec((1, TB, S), lambda g: (g, 0, 0)),        # attention (lane-dense)
            ],
        ),
        compiler_params=pltpu.CompilerParams(
            dimension_semantics=("parallel",),
            # Keep comfortably under v7x's 64 MiB physical VMEM; plenty for v5e/v6e.
            vmem_limit_bytes=28 * 1024 * 1024,
        ),
    )(key_r, value_r, qs_r, params["wk"], bk, gamma, beta, wa, ba)

    return out.reshape(B, V), att.reshape(B, S, 1)


def _reference(key, value, query_vec, params):
    A = params["wk"].shape[-1]
    score = key @ params["wk"] + params["bk"]
    score = score + (query_vec @ params["wq"] + params["bq"])[:, None, :]
    mean = jnp.mean(score, axis=-1, keepdims=True)
    var = jnp.mean((score - mean) ** 2, axis=-1, keepdims=True)
    score = (score - mean) / jnp.sqrt(var + 1e-5)
    score = score * params["gamma"].reshape(1, 1, A) + params["beta"].reshape(1, 1, A)
    score = jnp.where(score >= 0, score, 0.01 * score)
    att = score @ params["wa"].reshape(A, 1) + params["ba"]
    att = jax.nn.softmax(att, axis=1)
    out = jnp.sum(att * value, axis=1)
    return out, att


if __name__ == "__main__":
    B, S = 8, 8                     # batch, key sequence length
    K, A, V, Qv = 32, 32, 16, 24    # key_size, attention_size, value dim, query_vec_size

    root = jax.random.PRNGKey(0)
    ks = jax.random.split(root, 10)

    params = {
        "wk":    0.1 * jax.random.normal(ks[0], (K, A), jnp.float32),
        "bk":    0.1 * jax.random.normal(ks[1], (A,), jnp.float32),
        "wq":    0.1 * jax.random.normal(ks[2], (Qv, A), jnp.float32),
        "bq":    0.1 * jax.random.normal(ks[3], (A,), jnp.float32),
        "gamma": jnp.ones((A,), jnp.float32),
        "beta":  jnp.zeros((A,), jnp.float32),
        "wa":    0.1 * jax.random.normal(ks[4], (A,), jnp.float32),
        "ba":    0.1 * jax.random.normal(ks[5], (1,), jnp.float32),
    }

    key = jax.random.normal(ks[6], (B, S, K), jnp.float32)
    value = jax.random.normal(ks[7], (B, S, V), jnp.float32)
    query_vec = jax.random.normal(ks[8], (B, Qv), jnp.float32)

    out, score = mlp_attention(key, value, query_vec, params)
    out = jax.block_until_ready(out)
    score = jax.block_until_ready(score)

    ref_out, ref_score = _reference(key, value, query_vec, params)
    assert out.shape == (B, V) and score.shape == (B, S, 1)
    assert jnp.allclose(out, ref_out, rtol=1e-2, atol=1e-2)
    assert jnp.allclose(score, ref_score, rtol=1e-2, atol=1e-2)

    print("KERNEL_OK")
</pallas_src>

<mosaic_0001>
module attributes {stable_mosaic.version = 11 : i64} {
  func.func @_mlp_attention_kernel(%arg0: i32, %arg1: memref<1x4x8x32xf32, #tpu.memory_space<vmem>>, %arg2: memref<1x4x8x16xf32, #tpu.memory_space<vmem>>, %arg3: memref<1x4x32xf32, #tpu.memory_space<vmem>>, %arg4: memref<32x32xf32, #tpu.memory_space<vmem>>, %arg5: memref<1x32xf32, #tpu.memory_space<vmem>>, %arg6: memref<1x32xf32, #tpu.memory_space<vmem>>, %arg7: memref<1x32xf32, #tpu.memory_space<vmem>>, %arg8: memref<1x32xf32, #tpu.memory_space<vmem>>, %arg9: memref<1x1xf32, #tpu.memory_space<vmem>>, %arg10: memref<1x4x16xf32, #tpu.memory_space<vmem>>, %arg11: memref<1x4x8xf32, #tpu.memory_space<vmem>>) attributes {dimension_semantics = [#tpu.dimension_semantics<parallel>], iteration_bounds = array<i64: 2>, scalar_prefetch = 0 : i64, scratch_operands = 0 : i64, tpu.core_type = #tpu.core_type<tc>, window_params = [{transform_indices = @transform_0, window_bounds = array<i64: 1, 4, 8, 32>}, {transform_indices = @transform_1, window_bounds = array<i64: 1, 4, 8, 16>}, {transform_indices = @transform_2, window_bounds = array<i64: 1, 4, 32>}, {pipeline_mode = #tpu.pipeline_mode<synchronous>, transform_indices = @transform_3, window_bounds = array<i64: 32, 32>}, {pipeline_mode = #tpu.pipeline_mode<synchronous>, transform_indices = @transform_4, window_bounds = array<i64: 1, 32>}, {pipeline_mode = #tpu.pipeline_mode<synchronous>, transform_indices = @transform_5, window_bounds = array<i64: 1, 32>}, {pipeline_mode = #tpu.pipeline_mode<synchronous>, transform_indices = @transform_6, window_bounds = array<i64: 1, 32>}, {pipeline_mode = #tpu.pipeline_mode<synchronous>, transform_indices = @transform_7, window_bounds = array<i64: 1, 32>}, {pipeline_mode = #tpu.pipeline_mode<synchronous>, transform_indices = @transform_8, window_bounds = array<i64: 1, 1>}, {transform_indices = @transform_9, window_bounds = array<i64: 1, 4, 16>}, {transform_indices = @transform_10, window_bounds = array<i64: 1, 4, 8>}]} {
    %c0 = arith.constant 0 : index
    %c0_0 = arith.constant 0 : index
    %c0_1 = arith.constant 0 : index
    %c0_2 = arith.constant 0 : index
    %0 = vector.load %arg1[%c0, %c0_0, %c0_1, %c0_2] : memref<1x4x8x32xf32, #tpu.memory_space<vmem>>, vector<1x4x8x32xf32>
    %1 = vector.shape_cast %0 : vector<1x4x8x32xf32> to vector<4x8x32xf32>
    %c0_3 = arith.constant 0 : index
    %c0_4 = arith.constant 0 : index
    %c0_5 = arith.constant 0 : index
    %c0_6 = arith.constant 0 : index
    %2 = vector.load %arg2[%c0_3, %c0_4, %c0_5, %c0_6] : memref<1x4x8x16xf32, #tpu.memory_space<vmem>>, vector<1x4x8x16xf32>
    %3 = vector.shape_cast %2 : vector<1x4x8x16xf32> to vector<4x8x16xf32>
    %c0_7 = arith.constant 0 : index
    %c0_8 = arith.constant 0 : index
    %c0_9 = arith.constant 0 : index
    %4 = vector.load %arg3[%c0_7, %c0_8, %c0_9] : memref<1x4x32xf32, #tpu.memory_space<vmem>>, vector<1x4x32xf32>
    %5 = vector.shape_cast %4 : vector<1x4x32xf32> to vector<4x32xf32>
    %6 = vector.shape_cast %1 : vector<4x8x32xf32> to vector<32x32xf32>
    %c0_10 = arith.constant 0 : index
    %c0_11 = arith.constant 0 : index
    %7 = vector.load %arg4[%c0_10, %c0_11] : memref<32x32xf32, #tpu.memory_space<vmem>>, vector<32x32xf32>
    %cst = arith.constant dense<0.000000e+00> : vector<32x32xf32>
    %8 = tpu.matmul %6, %7, %cst {dimension_numbers = #tpu.dot_dimension_numbers<[1], [0], [0], [1], [0, 0, 1, 1], [], []>} : vector<32x32xf32>, vector<32x32xf32>, vector<32x32xf32> -> vector<32x32xf32>
    %c0_12 = arith.constant 0 : index
    %c0_13 = arith.constant 0 : index
    %9 = vector.load %arg5[%c0_12, %c0_13] : memref<1x32xf32, #tpu.memory_space<vmem>>, vector<1x32xf32>
    %10 = vector.broadcast %9 : vector<1x32xf32> to vector<32x32xf32>
    %11 = arith.addf %8, %10 : vector<32x32xf32>
    %12 = vector.shape_cast %11 : vector<32x32xf32> to vector<4x8x32xf32>
    %13 = vector.shape_cast %5 : vector<4x32xf32> to vector<4x1x32xf32>
    %14 = vector.broadcast %13 : vector<4x1x32xf32> to vector<4x8x32xf32>
    %15 = arith.addf %12, %14 : vector<4x8x32xf32>
    %cst_14 = arith.constant dense<0.000000e+00> : vector<4x8xf32>
    %16 = vector.multi_reduction <add>, %15, %cst_14 [2] : vector<4x8x32xf32> to vector<4x8xf32>
    %17 = vector.shape_cast %16 : vector<4x8xf32> to vector<4x8x1xf32>
    %cst_15 = arith.constant 3.200000e+01 : f32
    %18 = vector.broadcast %cst_15 : f32 to vector<4x8x1xf32>
    %19 = arith.divf %17, %18 : vector<4x8x1xf32>
    %20 = vector.broadcast %19 : vector<4x8x1xf32> to vector<4x8x32xf32>
    %21 = arith.subf %15, %20 : vector<4x8x32xf32>
    %22 = arith.mulf %21, %21 : vector<4x8x32xf32>
    %cst_16 = arith.constant dense<0.000000e+00> : vector<4x8xf32>
    %23 = vector.multi_reduction <add>, %22, %cst_16 [2] : vector<4x8x32xf32> to vector<4x8xf32>
    %24 = vector.shape_cast %23 : vector<4x8xf32> to vector<4x8x1xf32>
    %cst_17 = arith.constant 3.200000e+01 : f32
    %25 = vector.broadcast %cst_17 : f32 to vector<4x8x1xf32>
    %26 = arith.divf %24, %25 : vector<4x8x1xf32>
    %27 = vector.broadcast %19 : vector<4x8x1xf32> to vector<4x8x32xf32>
    %28 = arith.subf %15, %27 : vector<4x8x32xf32>
    %cst_18 = arith.constant 9.99999974E-6 : f32
    %29 = vector.broadcast %cst_18 : f32 to vector<4x8x1xf32>
    %30 = arith.addf %26, %29 : vector<4x8x1xf32>
    %31 = math.rsqrt %30 : vector<4x8x1xf32>
    %32 = vector.broadcast %31 : vector<4x8x1xf32> to vector<4x8x32xf32>
    %33 = arith.mulf %28, %32 : vector<4x8x32xf32>
    %c0_19 = arith.constant 0 : index
    %c0_20 = arith.constant 0 : index
    %34 = vector.load %arg6[%c0_19, %c0_20] : memref<1x32xf32, #tpu.memory_space<vmem>>, vector<1x32xf32>
    %35 = vector.shape_cast %34 : vector<1x32xf32> to vector<1x1x32xf32>
    %36 = vector.broadcast %35 : vector<1x1x32xf32> to vector<4x8x32xf32>
    %37 = arith.mulf %33, %36 : vector<4x8x32xf32>
    %c0_21 = arith.constant 0 : index
    %c0_22 = arith.constant 0 : index
    %38 = vector.load %arg7[%c0_21, %c0_22] : memref<1x32xf32, #tpu.memory_space<vmem>>, vector<1x32xf32>
    %39 = vector.shape_cast %38 : vector<1x32xf32> to vector<1x1x32xf32>
    %40 = vector.broadcast %39 : vector<1x1x32xf32> to vector<4x8x32xf32>
    %41 = arith.addf %37, %40 : vector<4x8x32xf32>
    %cst_23 = arith.constant 0.000000e+00 : f32
    %42 = vector.broadcast %cst_23 : f32 to vector<4x8x32xf32>
    %43 = arith.cmpf oge, %41, %42 : vector<4x8x32xf32>
    %cst_24 = arith.constant 0.00999999977 : f32
    %44 = vector.broadcast %cst_24 : f32 to vector<4x8x32xf32>
    %45 = arith.mulf %44, %41 : vector<4x8x32xf32>
    %46 = arith.select %43, %41, %45 : vector<4x8x32xi1>, vector<4x8x32xf32>
    %c0_25 = arith.constant 0 : index
    %c0_26 = arith.constant 0 : index
    %47 = vector.load %arg8[%c0_25, %c0_26] : memref<1x32xf32, #tpu.memory_space<vmem>>, vector<1x32xf32>
    %48 = vector.shape_cast %47 : vector<1x32xf32> to vector<1x1x32xf32>
    %49 = vector.broadcast %48 : vector<1x1x32xf32> to vector<4x8x32xf32>
    %50 = arith.mulf %46, %49 : vector<4x8x32xf32>
    %cst_27 = arith.constant dense<0.000000e+00> : vector<4x8xf32>
    %51 = vector.multi_reduction <add>, %50, %cst_27 [2] : vector<4x8x32xf32> to vector<4x8xf32>
    %c0_28 = arith.constant 0 : index
    %c0_29 = arith.constant 0 : index
    %52 = vector.load %arg9[%c0_28, %c0_29] : memref<1x1xf32, #tpu.memory_space<vmem>>, vector<1x1xf32>
    %53 = vector.broadcast %52 : vector<1x1xf32> to vector<4x8xf32>
    %54 = arith.addf %51, %53 : vector<4x8xf32>
    %cst_30 = arith.constant dense<0xFF800000> : vector<4xf32>
    %55 = vector.multi_reduction <maximumf>, %54, %cst_30 [1] : vector<4x8xf32> to vector<4xf32>
    %56 = vector.shape_cast %55 : vector<4xf32> to vector<4x1xf32>
    %57 = vector.broadcast %56 : vector<4x1xf32> to vector<4x8xf32>
    %58 = arith.subf %54, %57 : vector<4x8xf32>
    %59 = math.exp %58 : vector<4x8xf32>
    %cst_31 = arith.constant dense<0.000000e+00> : vector<4xf32>
    %60 = vector.multi_reduction <add>, %59, %cst_31 [1] : vector<4x8xf32> to vector<4xf32>
    %61 = vector.shape_cast %60 : vector<4xf32> to vector<4x1xf32>
    %62 = tpu.reciprocal %61 {approx = true} : vector<4x1xf32> -> vector<4x1xf32>
    %63 = vector.broadcast %62 : vector<4x1xf32> to vector<4x8xf32>
    %64 = arith.mulf %59, %63 : vector<4x8xf32>
    %65 = vector.shape_cast %64 : vector<4x8xf32> to vector<4x8x1xf32>
    %66 = vector.broadcast %65 : vector<4x8x1xf32> to vector<4x8x16xf32>
    %67 = arith.mulf %66, %3 : vector<4x8x16xf32>
    %cst_32 = arith.constant dense<0.000000e+00> : vector<4x16xf32>
    %68 = vector.multi_reduction <add>, %67, %cst_32 [1] : vector<4x8x16xf32> to vector<4x16xf32>
    %c0_33 = arith.constant 0 : index
    %c0_34 = arith.constant 0 : index
    %c0_35 = arith.constant 0 : index
    %69 = vector.load %arg10[%c0_33, %c0_34, %c0_35] : memref<1x4x16xf32, #tpu.memory_space<vmem>>, vector<1x4x16xf32>
    %70 = vector.shape_cast %69 : vector<1x4x16xf32> to vector<4x16xf32>
    %71 = vector.shape_cast %68 : vector<4x16xf32> to vector<1x4x16xf32>
    tpu.vector_store %arg10[%c0_33, %c0_34, %c0_35], %71 {strides = array<i32>} : memref<1x4x16xf32, #tpu.memory_space<vmem>>, vector<1x4x16xf32>,
    %c0_36 = arith.constant 0 : index
    %c0_37 = arith.constant 0 : index
    %c0_38 = arith.constant 0 : index
    %72 = vector.load %arg11[%c0_36, %c0_37, %c0_38] : memref<1x4x8xf32, #tpu.memory_space<vmem>>, vector<1x4x8xf32>
    %73 = vector.shape_cast %72 : vector<1x4x8xf32> to vector<4x8xf32>
    %74 = vector.shape_cast %64 : vector<4x8xf32> to vector<1x4x8xf32>
    tpu.vector_store %arg11[%c0_36, %c0_37, %c0_38], %74 {strides = array<i32>} : memref<1x4x8xf32, #tpu.memory_space<vmem>>, vector<1x4x8xf32>,
    return
  }
  func.func @transform_0(%arg0: i32) -> (i32, i32, i32, i32) {
    %c0_i32 = arith.constant 0 : i32
    %c0_i32_0 = arith.constant 0 : i32
    %c0_i32_1 = arith.constant 0 : i32
    %c0_i32_2 = arith.constant 0 : i32
    return %arg0, %c0_i32, %c0_i32_0, %c0_i32_1 : i32, i32, i32, i32
  }
  func.func @transform_1(%arg0: i32) -> (i32, i32, i32, i32) {
    %c0_i32 = arith.constant 0 : i32
    %c0_i32_0 = arith.constant 0 : i32
    %c0_i32_1 = arith.constant 0 : i32
    %c0_i32_2 = arith.constant 0 : i32
    return %arg0, %c0_i32, %c0_i32_0, %c0_i32_1 : i32, i32, i32, i32
  }
  func.func @transform_2(%arg0: i32) -> (i32, i32, i32) {
    %c0_i32 = arith.constant 0 : i32
    %c0_i32_0 = arith.constant 0 : i32
    %c0_i32_1 = arith.constant 0 : i32
    return %arg0, %c0_i32, %c0_i32_0 : i32, i32, i32
  }
  func.func @transform_3(%arg0: i32) -> (i32, i32) {
    %c0_i32 = arith.constant 0 : i32
    %c0_i32_0 = arith.constant 0 : i32
    %c0_i32_1 = arith.constant 0 : i32
    return %c0_i32, %c0_i32_0 : i32, i32
  }
  func.func @transform_4(%arg0: i32) -> (i32, i32) {
    %c0_i32 = arith.constant 0 : i32
    %c0_i32_0 = arith.constant 0 : i32
    %c0_i32_1 = arith.constant 0 : i32
    return %c0_i32, %c0_i32_0 : i32, i32
  }
  func.func @transform_5(%arg0: i32) -> (i32, i32) {
    %c0_i32 = arith.constant 0 : i32
    %c0_i32_0 = arith.constant 0 : i32
    %c0_i32_1 = arith.constant 0 : i32
    return %c0_i32, %c0_i32_0 : i32, i32
  }
  func.func @transform_6(%arg0: i32) -> (i32, i32) {
    %c0_i32 = arith.constant 0 : i32
    %c0_i32_0 = arith.constant 0 : i32
    %c0_i32_1 = arith.constant 0 : i32
    return %c0_i32, %c0_i32_0 : i32, i32
  }
  func.func @transform_7(%arg0: i32) -> (i32, i32) {
    %c0_i32 = arith.constant 0 : i32
    %c0_i32_0 = arith.constant 0 : i32
    %c0_i32_1 = arith.constant 0 : i32
    return %c0_i32, %c0_i32_0 : i32, i32
  }
  func.func @transform_8(%arg0: i32) -> (i32, i32) {
    %c0_i32 = arith.constant 0 : i32
    %c0_i32_0 = arith.constant 0 : i32
    %c0_i32_1 = arith.constant 0 : i32
    return %c0_i32, %c0_i32_0 : i32, i32
  }
  func.func @transform_9(%arg0: i32) -> (i32, i32, i32) {
    %c0_i32 = arith.constant 0 : i32
    %c0_i32_0 = arith.constant 0 : i32
    %c0_i32_1 = arith.constant 0 : i32
    return %arg0, %c0_i32, %c0_i32_0 : i32, i32, i32
  }
  func.func @transform_10(%arg0: i32) -> (i32, i32, i32) {
    %c0_i32 = arith.constant 0 : i32
    %c0_i32_0 = arith.constant 0 : i32
    %c0_i32_1 = arith.constant 0 : i32
    return %arg0, %c0_i32, %c0_i32_0 : i32, i32, i32
  }
}

</mosaic_0001>

<llo_original>
// kernel: tpu_custom_call.1
$region0: #{tpu_custom_call.1}
  #allocation0 [shape = 'u32[]', space=smem, size = 0x4, offset = 0x4, fixed_abs, tag = 'smem constant byte address 0x4 - core index']
  #allocation1 [shape = 'u32[144,128]{1,0:T(1,128)}', space=vmem, size = 0x12000, scoped, tag = 'internal scratch']
  #allocation2 [shape = 'f32[1,1]{1,0:T(1,128)S(1)}', space=vmem, size = 0x200, scoped, tag = 'scoped memory for tpu_custom_call.1']
  %s0 = inlined_call_operand.hbm [shape: f32[2,4,8,32], index: 0, kind: input, shape index: {}]
  %s1 = inlined_call_operand.hbm [shape: f32[2,4,8,16], index: 1, kind: input, shape index: {}]
  %s2 = inlined_call_operand.hbm [shape: f32[2,4,32], index: 2, kind: input, shape index: {}]
  %s3 = inlined_call_operand.hbm [shape: f32[32,32], index: 3, kind: input, shape index: {}]
  %s4 = inlined_call_operand.vmem [shape: f32[1,32], index: 4, kind: input, shape index: {}]
  %s5 = inlined_call_operand.vmem [shape: f32[1,32], index: 5, kind: input, shape index: {}]
  %s6 = inlined_call_operand.vmem [shape: f32[1,32], index: 6, kind: input, shape index: {}]
  %s7 = inlined_call_operand.vmem [shape: f32[1,32], index: 7, kind: input, shape index: {}]
  %s8 = inlined_call_operand.<no memory space> [shape: f32[1,1], index: 8, kind: input, shape index: {}]
  %s9 = inlined_call_operand.hbm [shape: f32[2,4,16], index: 9, kind: output, shape index: {0}]
  %s10 = inlined_call_operand.hbm [shape: f32[2,4,8], index: 10, kind: output, shape index: {1}]
  %11 = xla_tuple %s9, %s10
  %s12 = sld [smem:[#allocation0]]
  $region93: #{tpu_custom_call.1} parent=0
    _
  %s14 = ssub.s32 1, %s12
  %s15 = scalar_select 0, %s14, %s12
  %v16 = vstv %s8
  %17 = vst [vmem:[#allocation2] sm:$0x1] %v16
  $region1: #{tpu_custom_call.1} parent=0
    #allocation3 [shape = 'u8[32768]{0}', space=vmem, size = 0x8000, scoped, tag = 'input window, operand 0']
    #allocation4 [shape = 's32[2]{0}', space=sflag, size = 0x8, scoped, tag = 'scoped memory for tpu_custom_call.1']
    #allocation5 [shape = 's32[2]{0}', space=sflag, size = 0x8, scoped, tag = 'scoped memory for tpu_custom_call.1']
    #allocation6 [shape = 'u8[32768]{0}', space=vmem, size = 0x8000, scoped, tag = 'input window, operand 1']
    #allocation7 [shape = 's32[2]{0}', space=sflag, size = 0x8, scoped, tag = 'scoped memory for tpu_custom_call.1']
    #allocation8 [shape = 'u8[4096]{0}', space=vmem, size = 0x1000, scoped, tag = 'input window, operand 2']
    #allocation9 [shape = 'u8[16384]{0}', space=vmem, size = 0x4000, scoped, tag = 'input window, operand 3, single buffered']
    #allocation10 [shape = 's32[1]{0}', space=sflag, size = 0x4, scoped, tag = 'scoped memory for tpu_custom_call.1']
    #allocation11 [shape = 'u8[4096]{0}', space=vmem, size = 0x1000, scoped, tag = 'output window, operand 0']
    #allocation12 [shape = 'u8[4096]{0}', space=vmem, size = 0x1000, scoped, tag = 'output window, operand 1']
    #allocation13 [shape = 's32[2]{0}', space=sflag, size = 0x8, scoped, tag = 'scoped memory for tpu_custom_call.1']
    %18 = vsyncpa [#allocation4], 0
    %s19 = scalar_lea.sflag [#allocation4], 1
    %20 = vsyncpa %s19, 0
    %21 = vsyncpa [#allocation7], 0
    %s22 = scalar_lea.sflag [#allocation7], 1
    %23 = vsyncpa %s22, 0
    %24 = vsyncpa [#allocation10], 0
    %25 = vsyncpa [#allocation5], 0
    %s26 = scalar_lea.sflag [#allocation5], 1
    %27 = vsyncpa %s26, 0
    %28 = vsyncpa [#allocation13], 0
    %s29 = scalar_lea.sflag [#allocation13], 1
    %30 = vsyncpa %s29, 0
    loop: start=0, step=1, limit=4
    $region2: #{tpu_custom_call.1} parent=1 // loop_pre_header
      _
    $region3: #{tpu_custom_call.1} parent=1 // loop_header
      %s32 = sphi 0, %s36
      %p33 = scmp.ge.s32.totalorder %s32, 4
      %s42 = sphi 0, %s44
      %s45 = sphi 0, %s42
      %s46 = sphi 0, %s45
      %s62 = sphi 0, %s46
      %s68 = sphi 0, %s70
      %s71 = sphi 0, %s68
      %s72 = sphi 0, %s71
      %s88 = sphi 0, %s72
      %s94 = sphi 0, %s96
      %s97 = sphi 0, %s94
      %s98 = sphi 0, %s97
      %s114 = sphi 0, %s98
      %s118 = sphi 0, %s118
      %s120 = sphi 0, %s118
      %s121 = sphi 0, %s120
      %s135 = sphi 0, %s121
      %s139 = sphi 0, %s139
      %s141 = sphi 0, %s139
      %s142 = sphi 0, %s141
      %s156 = sphi 0, %s142
      %s160 = sphi 0, %s160
      %s162 = sphi 0, %s160
      %s163 = sphi 0, %s162
      %s177 = sphi 0, %s163
      %s181 = sphi 0, %s181
      %s183 = sphi 0, %s181
      %s184 = sphi 0, %s183
      %s198 = sphi 0, %s184
      %s202 = sphi 0, %s202
      %s204 = sphi 0, %s202
      %s205 = sphi 0, %s204
      %s219 = sphi 0, %s205
      %s223 = sphi 0, %s223
      %s225 = sphi 0, %s223
      %s226 = sphi 0, %s225
      %s240 = sphi 0, %s226
      %s246 = sphi 0, %s248
      %s249 = sphi 0, %s246
      %s250 = sphi 0, %s249
      %s266 = sphi 0, %s250
      %s272 = sphi 0, %s274
      %s275 = sphi 0, %s272
      %s276 = sphi 0, %s275
      %s292 = sphi 0, %s276
    $region4: #{tpu_custom_call.1} parent=1 // loop_header_branch
      %35 = sbr.rel (%p33) target = $region8
    $region5: #{tpu_custom_call.1} parent=1 // loop_body
      %s37 = ssub.s32 %s32, 1
      %s38 = ssub.s32 %s32, 2
      %s39 = sadd.s32 %s32, 1
      %s40 = ssub.s32 %s32, %s39
      %p41 = scmp.eq.s32.totalorder %s40, 0
      %s43 = sadd.s32 %s42, 1
      %s44 = scalar_select %p41, %s42, %s43
      %p47 = pneg %p41
      %p48 = scmp.eq.s32.totalorder %s32, 1
      %p49 = por %p47, %p48
      %p50 = scmp.ne.s32.totalorder %s42, %s45
      %p51 = scmp.eq.s32.totalorder %s32, 0
      %p52 = por %p50, %p51
      %p53 = scmp.ne.s32.totalorder %s42, %s45
      %p54 = scmp.eq.s32.totalorder %s37, 1
      %p55 = por %p53, %p54
      %p56 = scmp.ne.s32.totalorder %s45, %s46
      %p57 = scmp.eq.s32.totalorder %s37, 0
      %p58 = por %p56, %p57
      %p59 = scmp.ne.s32.totalorder %s45, %s46
      %p60 = scmp.eq.s32.totalorder %s38, 1
      %p61 = por %p59, %p60
      %p63 = scmp.ne.s32.totalorder %s46, %s62
      %p64 = scmp.eq.s32.totalorder %s38, 0
      %p65 = por %p63, %p64
      %s66 = ssub.s32 %s32, %s39
      %p67 = scmp.eq.s32.totalorder %s66, 0
      %s69 = sadd.s32 %s68, 1
      %s70 = scalar_select %p67, %s68, %s69
      %p73 = pneg %p67
      %p74 = scmp.eq.s32.totalorder %s32, 1
      %p75 = por %p73, %p74
      %p76 = scmp.ne.s32.totalorder %s68, %s71
      %p77 = scmp.eq.s32.totalorder %s32, 0
      %p78 = por %p76, %p77
      %p79 = scmp.ne.s32.totalorder %s68, %s71
      %p80 = scmp.eq.s32.totalorder %s37, 1
      %p81 = por %p79, %p80
      %p82 = scmp.ne.s32.totalorder %s71, %s72
      %p83 = scmp.eq.s32.totalorder %s37, 0
      %p84 = por %p82, %p83
      %p85 = scmp.ne.s32.totalorder %s71, %s72
      %p86 = scmp.eq.s32.totalorder %s38, 1
      %p87 = por %p85, %p86
      %p89 = scmp.ne.s32.totalorder %s72, %s88
      %p90 = scmp.eq.s32.totalorder %s38, 0
      %p91 = por %p89, %p90
      %s92 = ssub.s32 %s32, %s39
      %p93 = scmp.eq.s32.totalorder %s92, 0
      %s95 = sadd.s32 %s94, 1
      %s96 = scalar_select %p93, %s94, %s95
      %p99 = pneg %p93
      %p100 = scmp.eq.s32.totalorder %s32, 1
      %p101 = por %p99, %p100
      %p102 = scmp.ne.s32.totalorder %s94, %s97
      %p103 = scmp.eq.s32.totalorder %s32, 0
      %p104 = por %p102, %p103
      %p105 = scmp.ne.s32.totalorder %s94, %s97
      %p106 = scmp.eq.s32.totalorder %s37, 1
      %p107 = por %p105, %p106
      %p108 = scmp.ne.s32.totalorder %s97, %s98
      %p109 = scmp.eq.s32.totalorder %s37, 0
      %p110 = por %p108, %p109
      %p111 = scmp.ne.s32.totalorder %s97, %s98
      %p112 = scmp.eq.s32.totalorder %s38, 1
      %p113 = por %p111, %p112
      %p115 = scmp.ne.s32.totalorder %s98, %s114
      %p116 = scmp.eq.s32.totalorder %s38, 0
      %p117 = por %p115, %p116
      %s119 = sadd.s32 %s118, 1
      %p122 = scmp.eq.s32.totalorder %s32, 1
      %p123 = scmp.ne.s32.totalorder %s118, %s120
      %p124 = scmp.eq.s32.totalorder %s32, 0
      %p125 = por %p123, %p124
      %p126 = scmp.ne.s32.totalorder %s118, %s120
      %p127 = scmp.eq.s32.totalorder %s37, 1
      %p128 = por %p126, %p127
      %p129 = scmp.ne.s32.totalorder %s120, %s121
      %p130 = scmp.eq.s32.totalorder %s37, 0
      %p131 = por %p129, %p130
      %p132 = scmp.ne.s32.totalorder %s120, %s121
      %p133 = scmp.eq.s32.totalorder %s38, 1
      %p134 = por %p132, %p133
      %p136 = scmp.ne.s32.totalorder %s121, %s135
      %p137 = scmp.eq.s32.totalorder %s38, 0
      %p138 = por %p136, %p137
      %s140 = sadd.s32 %s139, 1
      %p143 = scmp.eq.s32.totalorder %s32, 1
      %p144 = scmp.ne.s32.totalorder %s139, %s141
      %p145 = scmp.eq.s32.totalorder %s32, 0
      %p146 = por %p144, %p145
      %p147 = scmp.ne.s32.totalorder %s139, %s141
      %p148 = scmp.eq.s32.totalorder %s37, 1
      %p149 = por %p147, %p148
      %p150 = scmp.ne.s32.totalorder %s141, %s142
      %p151 = scmp.eq.s32.totalorder %s37, 0
      %p152 = por %p150, %p151
      %p153 = scmp.ne.s32.totalorder %s141, %s142
      %p154 = scmp.eq.s32.totalorder %s38, 1
      %p155 = por %p153, %p154
      %p157 = scmp.ne.s32.totalorder %s142, %s156
      %p158 = scmp.eq.s32.totalorder %s38, 0
      %p159 = por %p157, %p158
      %s161 = sadd.s32 %s160, 1
      %p164 = scmp.eq.s32.totalorder %s32, 1
      %p165 = scmp.ne.s32.totalorder %s160, %s162
      %p166 = scmp.eq.s32.totalorder %s32, 0
      %p167 = por %p165, %p166
      %p168 = scmp.ne.s32.totalorder %s160, %s162
      %p169 = scmp.eq.s32.totalorder %s37, 1
      %p170 = por %p168, %p169
      %p171 = scmp.ne.s32.totalorder %s162, %s163
      %p172 = scmp.eq.s32.totalorder %s37, 0
      %p173 = por %p171, %p172
      %p174 = scmp.ne.s32.totalorder %s162, %s163
      %p175 = scmp.eq.s32.totalorder %s38, 1
      %p176 = por %p174, %p175
      %p178 = scmp.ne.s32.totalorder %s163, %s177
      %p179 = scmp.eq.s32.totalorder %s38, 0
      %p180 = por %p178, %p179
      %s182 = sadd.s32 %s181, 1
      %p185 = scmp.eq.s32.totalorder %s32, 1
      %p186 = scmp.ne.s32.totalorder %s181, %s183
      %p187 = scmp.eq.s32.totalorder %s32, 0
      %p188 = por %p186, %p187
      %p189 = scmp.ne.s32.totalorder %s181, %s183
      %p190 = scmp.eq.s32.totalorder %s37, 1
      %p191 = por %p189, %p190
      %p192 = scmp.ne.s32.totalorder %s183, %s184
      %p193 = scmp.eq.s32.totalorder %s37, 0
      %p194 = por %p192, %p193
      %p195 = scmp.ne.s32.totalorder %s183, %s184
      %p196 = scmp.eq.s32.totalorder %s38, 1
      %p197 = por %p195, %p196
      %p199 = scmp.ne.s32.totalorder %s184, %s198
      %p200 = scmp.eq.s32.totalorder %s38, 0
      %p201 = por %p199, %p200
      %s203 = sadd.s32 %s202, 1
      %p206 = scmp.eq.s32.totalorder %s32, 1
      %p207 = scmp.ne.s32.totalorder %s202, %s204
      %p208 = scmp.eq.s32.totalorder %s32, 0
      %p209 = por %p207, %p208
      %p210 = scmp.ne.s32.totalorder %s202, %s204
      %p211 = scmp.eq.s32.totalorder %s37, 1
      %p212 = por %p210, %p211
      %p213 = scmp.ne.s32.totalorder %s204, %s205
      %p214 = scmp.eq.s32.totalorder %s37, 0
      %p215 = por %p213, %p214
      %p216 = scmp.ne.s32.totalorder %s204, %s205
      %p217 = scmp.eq.s32.totalorder %s38, 1
      %p218 = por %p216, %p217
      %p220 = scmp.ne.s32.totalorder %s205, %s219
      %p221 = scmp.eq.s32.totalorder %s38, 0
      %p222 = por %p220, %p221
      %s224 = sadd.s32 %s223, 1
      %p227 = scmp.eq.s32.totalorder %s32, 1
      %p228 = scmp.ne.s32.totalorder %s223, %s225
      %p229 = scmp.eq.s32.totalorder %s32, 0
      %p230 = por %p228, %p229
      %p231 = scmp.ne.s32.totalorder %s223, %s225
      %p232 = scmp.eq.s32.totalorder %s37, 1
      %p233 = por %p231, %p232
      %p234 = scmp.ne.s32.totalorder %s225, %s226
      %p235 = scmp.eq.s32.totalorder %s37, 0
      %p236 = por %p234, %p235
      %p237 = scmp.ne.s32.totalorder %s225, %s226
      %p238 = scmp.eq.s32.totalorder %s38, 1
      %p239 = por %p237, %p238
      %p241 = scmp.ne.s32.totalorder %s226, %s240
      %p242 = scmp.eq.s32.totalorder %s38, 0
      %p243 = por %p241, %p242
      %s244 = ssub.s32 %s32, %s39
      %p245 = scmp.eq.s32.totalorder %s244, 0
      %s247 = sadd.s32 %s246, 1
      %s248 = scalar_select %p245, %s246, %s247
      %p251 = pneg %p245
      %p252 = scmp.eq.s32.totalorder %s32, 1
      %p253 = por %p251, %p252
      %p254 = scmp.ne.s32.totalorder %s246, %s249
      %p255 = scmp.eq.s32.totalorder %s32, 0
      %p256 = por %p254, %p255
      %p257 = scmp.ne.s32.totalorder %s246, %s249
      %p258 = scmp.eq.s32.totalorder %s37, 1
      %p259 = por %p257, %p258
      %p260 = scmp.ne.s32.totalorder %s249, %s250
      %p261 = scmp.eq.s32.totalorder %s37, 0
      %p262 = por %p260, %p261
      %p263 = scmp.ne.s32.totalorder %s249, %s250
      %p264 = scmp.eq.s32.totalorder %s38, 1
      %p265 = por %p263, %p264
      %p267 = scmp.ne.s32.totalorder %s250, %s266
      %p268 = scmp.eq.s32.totalorder %s38, 0
      %p269 = por %p267, %p268
      %s270 = ssub.s32 %s32, %s39
      %p271 = scmp.eq.s32.totalorder %s270, 0
      %s273 = sadd.s32 %s272, 1
      %s274 = scalar_select %p271, %s272, %s273
      %p277 = pneg %p271
      %p278 = scmp.eq.s32.totalorder %s32, 1
      %p279 = por %p277, %p278
      %p280 = scmp.ne.s32.totalorder %s272, %s275
      %p281 = scmp.eq.s32.totalorder %s32, 0
      %p282 = por %p280, %p281
      %p283 = scmp.ne.s32.totalorder %s272, %s275
      %p284 = scmp.eq.s32.totalorder %s37, 1
      %p285 = por %p283, %p284
      %p286 = scmp.ne.s32.totalorder %s275, %s276
      %p287 = scmp.eq.s32.totalorder %s37, 0
      %p288 = por %p286, %p287
      %p289 = scmp.ne.s32.totalorder %s275, %s276
      %p290 = scmp.eq.s32.totalorder %s38, 1
      %p291 = por %p289, %p290
      %p293 = scmp.ne.s32.totalorder %s276, %s292
      %p294 = scmp.eq.s32.totalorder %s38, 0
      %p295 = por %p293, %p294
      %p296 = scmp.le.s32.totalorder 1, %s32
      %p297 = scmp.lt.s32.totalorder %s32, 3
      %p298 = pnand %p296, %p297
      %p299 = pneg %p298
      // Predicated region
      $region9: #{tpu_custom_call.1} parent=5 // pred_check
        _
      $region10: #{tpu_custom_call.1} parent=5 // pred_check_branch
        %301 = sbr.rel (%p298) target = $region12
      $region11: #{tpu_custom_call.1} parent=5 // pred_region
        %s302 = ssub.s32 %s32, 1
        // Predicated region
        $region13: #{tpu_custom_call.1} parent=11 // pred_check
          %p303 = pneg %p131
        $region14: #{tpu_custom_call.1} parent=11 // pred_check_branch
          %305 = sbr.rel (%p303) target = $region16
        $region15: #{tpu_custom_call.1} parent=11 // pred_region
          %s307 = ssub.s32 512, 512
          %308 = vsyncadd [#allocation10], %s307
          %s309 = sshll.u32 [#allocation9], 4
          %s310 = int_to_ptr.vmem [resolvable:$true] %s309
          %315 = dma.hbm_to_vmem [thread:$0]  %s3, 512, %s310, [#allocation10], 128, 128, 8
        $region16: #{tpu_custom_call.1} parent=11 // pred_fallthru
          _
        // Predicated region
        $region17: #{tpu_custom_call.1} parent=11 // pred_check
          %p316 = pneg %p152
        $region18: #{tpu_custom_call.1} parent=11 // pred_check_branch
          %318 = sbr.rel (%p316) target = $region20
        $region19: #{tpu_custom_call.1} parent=11 // pred_region
          _
        $region20: #{tpu_custom_call.1} parent=11 // pred_fallthru
          _
        // Predicated region
        $region21: #{tpu_custom_call.1} parent=11 // pred_check
          %p319 = pneg %p173
        $region22: #{tpu_custom_call.1} parent=11 // pred_check_branch
          %321 = sbr.rel (%p319) target = $region24
        $region23: #{tpu_custom_call.1} parent=11 // pred_region
          _
        $region24: #{tpu_custom_call.1} parent=11 // pred_fallthru
          _
        // Predicated region
        $region25: #{tpu_custom_call.1} parent=11 // pred_check
          %p322 = pneg %p194
        $region26: #{tpu_custom_call.1} parent=11 // pred_check_branch
          %324 = sbr.rel (%p322) target = $region28
        $region27: #{tpu_custom_call.1} parent=11 // pred_region
          _
        $region28: #{tpu_custom_call.1} parent=11 // pred_fallthru
          _
        // Predicated region
        $region29: #{tpu_custom_call.1} parent=11 // pred_check
          %p325 = pneg %p215
        $region30: #{tpu_custom_call.1} parent=11 // pred_check_branch
          %327 = sbr.rel (%p325) target = $region32
        $region31: #{tpu_custom_call.1} parent=11 // pred_region
          _
        $region32: #{tpu_custom_call.1} parent=11 // pred_fallthru
          _
        // Predicated region
        $region33: #{tpu_custom_call.1} parent=11 // pred_check
          %p328 = pneg %p236
        $region34: #{tpu_custom_call.1} parent=11 // pred_check_branch
          %330 = sbr.rel (%p328) target = $region36
        $region35: #{tpu_custom_call.1} parent=11 // pred_region
          _
        $region36: #{tpu_custom_call.1} parent=11 // pred_fallthru
          _
      $region12: #{tpu_custom_call.1} parent=5 // pred_fallthru
        _
      %p331 = scmp.lt.s32.totalorder %s32, 2
      // Predicated region
      $region37: #{tpu_custom_call.1} parent=5 // pred_check
        %p332 = pneg %p331
      $region38: #{tpu_custom_call.1} parent=5 // pred_check_branch
        %334 = sbr.rel (%p332) target = $region40
      $region39: #{tpu_custom_call.1} parent=5 // pred_region
        // Predicated region
        $region41: #{tpu_custom_call.1} parent=39 // pred_check
          %p335 = pneg %p52
        $region42: #{tpu_custom_call.1} parent=39 // pred_check_branch
          %337 = sbr.rel (%p335) target = $region44
        $region43: #{tpu_custom_call.1} parent=39 // pred_region
          %s338 = sand.u32 %s42, 1
          %s339 = scalar_lea.sflag [#allocation4], %s338
          %s340 = sand.u32 %s42, 1
          %s341 = smul.addr %s340, 32
          %s342 = scalar_lea.vmem [#allocation3], %s341
          %s344 = ssub.s32 512, 512
          %345 = vsyncadd %s339, %s344
          %s346 = smul.addr %s32, 4
          %s347 = smul.addr %s346, 128
          %s348 = scalar_lea.hbm %s0, %s347
          %s349 = sshll.u32 %s342, 4
          %s350 = int_to_ptr.vmem [resolvable:$true] %s349
          %355 = dma.hbm_to_vmem [thread:$0]  %s348, 512, %s350, %s339, 128, 128, 8
        $region44: #{tpu_custom_call.1} parent=39 // pred_fallthru
          _
        // Predicated region
        $region45: #{tpu_custom_call.1} parent=39 // pred_check
          %p356 = pneg %p78
        $region46: #{tpu_custom_call.1} parent=39 // pred_check_branch
          %358 = sbr.rel (%p356) target = $region48
        $region47: #{tpu_custom_call.1} parent=39 // pred_region
          %s359 = sand.u32 %s32, 1
          %s360 = scalar_lea.sflag [#allocation7], %s359
          %s361 = sand.u32 %s68, 1
          %s362 = smul.addr %s361, 32
          %s363 = scalar_lea.vmem [#allocation6], %s362
          %s365 = ssub.s32 512, 512
          %366 = vsyncadd %s360, %s365
          %s367 = smul.addr %s32, 4
          %s368 = smul.addr %s367, 128
          %s369 = scalar_lea.hbm %s1, %s368
          %s370 = sshll.u32 %s363, 4
          %s371 = int_to_ptr.vmem [resolvable:$true] %s370
          %376 = dma.hbm_to_vmem [thread:$0]  %s369, 512, %s371, %s360, 128, 128, 8
        $region48: #{tpu_custom_call.1} parent=39 // pred_fallthru
          _
        // Predicated region
        $region49: #{tpu_custom_call.1} parent=39 // pred_check
          %p377 = pneg %p104
        $region50: #{tpu_custom_call.1} parent=39 // pred_check_branch
          %379 = sbr.rel (%p377) target = $region52
        $region51: #{tpu_custom_call.1} parent=39 // pred_region
          %s380 = sand.u32 %s32, 1
          %s381 = scalar_lea.sflag [#allocation7], %s380
          %s382 = sand.u32 %s94, 1
          %s383 = smul.addr %s382, 4
          %s384 = scalar_lea.vmem [#allocation8], %s383
          %s386 = ssub.s32 64, 64
          %387 = vsyncadd %s381, %s386
          %s388 = smul.addr %s32, 64
          %s389 = scalar_lea.hbm %s2, %s388
          %s391 = sshll.u32 %s384, 4
          %s392 = int_to_ptr.vmem [resolvable:$true] %s391
          %394 = dma.hbm_to_vmem [thread:$0]  %s389, 64, %s392, %s381
        $region52: #{tpu_custom_call.1} parent=39 // pred_fallthru
          _
      $region40: #{tpu_custom_call.1} parent=5 // pred_fallthru
        _
      %p395 = scmp.le.s32.totalorder 1, %s32
      %p396 = scmp.lt.s32.totalorder %s32, 3
      %p397 = pnand %p395, %p396
      %p398 = pneg %p397
      // Predicated region
      $region53: #{tpu_custom_call.1} parent=5 // pred_check
        _
      $region54: #{tpu_custom_call.1} parent=5 // pred_check_branch
        %400 = sbr.rel (%p397) target = $region56
      $region55: #{tpu_custom_call.1} parent=5 // pred_region
        %s401 = ssub.s32 %s32, 1
        %s402 = sand.u32 %s45, 1
        %s403 = scalar_lea.sflag [#allocation4], %s402
        %s404 = sand.u32 %s45, 1
        %s405 = smul.addr %s404, 32
        %s406 = scalar_lea.vmem [#allocation3], %s405
        // Predicated region
        $region57: #{tpu_custom_call.1} parent=55 // pred_check
          %p407 = pneg %p58
        $region58: #{tpu_custom_call.1} parent=55 // pred_check_branch
          %409 = sbr.rel (%p407) target = $region60
        $region59: #{tpu_custom_call.1} parent=55 // pred_region
          %410 = dma.done %s403, 512
        $region60: #{tpu_custom_call.1} parent=55 // pred_fallthru
          _
        %s411 = sand.u32 %s37, 1
        %s412 = scalar_lea.sflag [#allocation7], %s411
        %s413 = sand.u32 %s71, 1
        %s414 = smul.addr %s413, 32
        %s415 = scalar_lea.vmem [#allocation6], %s414
        // Predicated region
        $region61: #{tpu_custom_call.1} parent=55 // pred_check
          %p416 = pneg %p84
        $region62: #{tpu_custom_call.1} parent=55 // pred_check_branch
          %418 = sbr.rel (%p416) target = $region64
        $region63: #{tpu_custom_call.1} parent=55 // pred_region
          %419 = dma.done %s412, 512
        $region64: #{tpu_custom_call.1} parent=55 // pred_fallthru
          _
        %s420 = sand.u32 %s37, 1
        %s421 = scalar_lea.sflag [#allocation7], %s420
        %s422 = sand.u32 %s97, 1
        %s423 = smul.addr %s422, 4
        %s424 = scalar_lea.vmem [#allocation8], %s423
        // Predicated region
        $region65: #{tpu_custom_call.1} parent=55 // pred_check
          %p425 = pneg %p110
        $region66: #{tpu_custom_call.1} parent=55 // pred_check_branch
          %427 = sbr.rel (%p425) target = $region68
        $region67: #{tpu_custom_call.1} parent=55 // pred_region
          %428 = dma.done %s421, 64
        $region68: #{tpu_custom_call.1} parent=55 // pred_fallthru
          _
        // Predicated region
        $region69: #{tpu_custom_call.1} parent=55 // pred_check
          %p429 = pneg %p131
        $region70: #{tpu_custom_call.1} parent=55 // pred_check_branch
          %431 = sbr.rel (%p429) target = $region72
        $region71: #{tpu_custom_call.1} parent=55 // pred_region
          %432 = dma.done [#allocation10], 512
        $region72: #{tpu_custom_call.1} parent=55 // pred_fallthru
          _
        %s433 = sand.u32 %s45, 1
        %s434 = scalar_lea.sflag [#allocation4], %s433
        %s435 = sand.u32 %s45, 1
        %s436 = smul.addr %s435, 32
        %s437 = scalar_lea.vmem [#allocation3], %s436
        %p438 = pneg %p58
        %p439 = pneg %p55
        %s440 = sand.u32 %s37, 1
        %s441 = scalar_lea.sflag [#allocation7], %s440
        %s442 = sand.u32 %s71, 1
        %s443 = smul.addr %s442, 32
        %s444 = scalar_lea.vmem [#allocation6], %s443
        %p445 = pneg %p84
        %p446 = pneg %p81
        %s447 = sand.u32 %s37, 1
        %s448 = scalar_lea.sflag [#allocation7], %s447
        %s449 = sand.u32 %s97, 1
        %s450 = smul.addr %s449, 4
        %s451 = scalar_lea.vmem [#allocation8], %s450
        %p452 = pneg %p110
        %p453 = pneg %p107
        %p454 = pneg %p131
        %p455 = pneg %p128
        %p456 = pneg %p152
        %p457 = pneg %p149
        %p458 = pneg %p173
        %p459 = pneg %p170
        %p460 = pneg %p194
        %p461 = pneg %p191
        %p462 = pneg %p215
        %p463 = pneg %p212
        %p464 = pneg %p236
        %p465 = pneg %p233
        %p466 = pneg %p262
        %p467 = pneg %p259
        %s468 = sand.u32 %s249, 1
        %s469 = scalar_lea.sflag [#allocation5], %s468
        %s470 = sand.u32 %s249, 1
        %s471 = smul.addr %s470, 4
        %s472 = scalar_lea.vmem [#allocation11], %s471
        %p473 = pneg %p288
        %p474 = pneg %p285
        %s475 = sand.u32 %s275, 1
        %s476 = scalar_lea.sflag [#allocation13], %s475
        %s477 = sand.u32 %s275, 1
        %s478 = smul.addr %s477, 4
        %s479 = scalar_lea.vmem [#allocation12], %s478
        %v480 = vld [vmem:[%s406] sm:$0xff]
        %v481 = vld [vmem:[%s406 + $0x8] sm:$0xff]
        %v482 = vld [vmem:[%s406 + $0x10] sm:$0xff]
        %v483 = vld [vmem:[%s406 + $0x18] sm:$0xff]
        %v484 = vld [vmem:[%s415] sm:$0xff]
        %v485 = vld [vmem:[%s415 + $0x8] sm:$0xff]
        %v486 = vld [vmem:[%s415 + $0x10] sm:$0xff]
        %v487 = vld [vmem:[%s415 + $0x18] sm:$0xff]
        %v488 = vld [vmem:[%s424] sm:$0xf]
        %v489 = vld [vmem:[#allocation9] sm:$0xff]
        %v490 = vld [vmem:[#allocation9 + $0x8] sm:$0xff]
        %v491 = vld [vmem:[#allocation9 + $0x10] sm:$0xff]
        %v492 = vld [vmem:[#allocation9 + $0x18] sm:$0xff]
        %v493 = vld [vmem:[%s4] sm:$0x1]
        %v495 = vlaneseq
        %v496 = vshrl.u32 %v495, 7
        %v497 = vsub.s32 0, %v496
        %v498 = vrot.slane %v493, %v497
        %vm500 = vcmask 261120
        %v502 = vsel %vm500, %v480, 0
        %v505 = vsel %vm500, %v481, 0
        %v508 = vsel %vm500, %v482, 0
        %v511 = vsel %vm500, %v483, 0
        %513 = vmatprep.subr.mxu0 0.0
        %514 = vmatpush1.msra.mxu0 0.0
        %515 = vmatprep.subr.mxu0 0.0
        %516 = vmatpush1.msra.mxu0 0.0
        %517 = vmatprep.subr.mxu0 0.0
        %518 = vmatpush1.msra.mxu0 0.0
        %519 = vmatprep.subr.mxu0 0.0
        %520 = vmatpush1.msra.mxu0 0.0
        %521 = vmatprep.subr.mxu0 0.0
        %522 = vmatpush1.msra.mxu0 0.0
        %523 = vmatprep.subr.mxu0 0.0
        %524 = vmatpush1.msra.mxu0 0.0
        %525 = vmatprep.subr.mxu0 0.0
        %526 = vmatpush1.msra.mxu0 0.0
        %527 = vmatprep.subr.mxu0 0.0
        %528 = vmatpush1.msra.mxu0 0.0
        %529 = vmatprep.subr.mxu0 0.0
        %530 = vmatpush1.msra.mxu0 0.0
        %531 = vmatprep.subr.mxu0 0.0
        %532 = vmatpush1.msra.mxu0 0.0
        %533 = vmatprep.subr.mxu0 0.0
        %534 = vmatpush1.msra.mxu0 0.0
        %535 = vmatprep.subr.mxu0 0.0
        %536 = vmatpush1.msra.mxu0 0.0
        %537 = vmatprep.subr.mxu0 0.0
        %538 = vmatpush1.msra.mxu0 %v492
        %539 = vmatprep.subr.mxu0 0.0
        %540 = vmatpush1.msra.mxu0 %v491
        %541 = vmatprep.subr.mxu0 0.0
        %542 = vmatpush1.msra.mxu0 %v490
        %543 = vmatprep.subr.mxu0 0.0
        %544 = vmatpush1.msra.mxu0 %v489
        %545 = vmatprep.subr.mxu0 0.0
        %546 = vmatpush2.msra.mxu0 0.0
        %547 = vmatprep.subr.mxu0 0.0
        %548 = vmatpush2.msra.mxu0 0.0
        %549 = vmatprep.subr.mxu0 0.0
        %550 = vmatpush2.msra.mxu0 0.0
        %551 = vmatprep.subr.mxu0 0.0
        %552 = vmatpush2.msra.mxu0 0.0
        %553 = vmatprep.subr.mxu0 0.0
        %554 = vmatpush2.msra.mxu0 0.0
        %555 = vmatprep.subr.mxu0 0.0
        %556 = vmatpush2.msra.mxu0 0.0
        %557 = vmatprep.subr.mxu0 0.0
        %558 = vmatpush2.msra.mxu0 0.0
        %559 = vmatprep.subr.mxu0 0.0
        %560 = vmatpush2.msra.mxu0 0.0
        %561 = vmatprep.subr.mxu0 0.0
        %562 = vmatpush2.msra.mxu0 0.0
        %563 = vmatprep.subr.mxu0 0.0
        %564 = vmatpush2.msra.mxu0 0.0
        %565 = vmatprep.subr.mxu0 0.0
        %566 = vmatpush2.msra.mxu0 0.0
        %567 = vmatprep.subr.mxu0 0.0
        %568 = vmatpush2.msra.mxu0 0.0
        %569 = vmatprep.subr.mxu0 0.0
        %570 = vmatpush2.msra.mxu0 0.0
        %571 = vmatprep.subr.mxu0 0.0
        %572 = vmatpush2.msra.mxu0 0.0
        %573 = vmatprep.subr.mxu0 0.0
        %574 = vmatpush2.msra.mxu0 0.0
        %575 = vmatprep.subr.mxu0 0.0
        %576 = vmatpush2.msra.mxu0 0.0
        %577 = vmatprep.mubr.f32.mxu0 0.0
        %578 = vmatmul.mubr.f32.gmra.mxu0 %v502
        %v579 = vpop.f32.mrf.mxu0
        %v580 = vadd.f32 %v498, %v579
        %v581 = vpop.f32.mrf.mxu0
        %582 = vmatprep.mubr.f32.mxu0 0.0
        %583 = vmatmul.mubr.f32.gmra.mxu0 %v505
        %v584 = vpop.f32.mrf.mxu0
        %v585 = vadd.f32 %v498, %v584
        %v586 = vpop.f32.mrf.mxu0
        %587 = vmatprep.mubr.f32.mxu0 0.0
        %588 = vmatmul.mubr.f32.gmra.mxu0 %v508
        %v589 = vpop.f32.mrf.mxu0
        %v590 = vadd.f32 %v498, %v589
        %v591 = vpop.f32.mrf.mxu0
        %592 = vmatprep.mubr.f32.mxu0 0.0
        %593 = vmatmul.mubr.f32.gmra.mxu0 %v511
        %v594 = vpop.f32.mrf.mxu0
        %v595 = vadd.f32 %v498, %v594
        %v596 = vpop.f32.mrf.mxu0
        %597 = vdwg.mxu0
        %v600 = vunpack.c.l.s4 1966171168
        %v601 = vunpack.c.0.s8 %v600
        %v602 = vlaneseq
        %v603 = vshrl.u32 %v602, 7
        %v604 = vsub.s32 %v601, %v603
        %v605 = vrot.slane %v488, %v604
        %v606 = vcombine.high %v605, %v605
        %v608 = vunpack.c.l.s4 1966171168
        %v609 = vunpack.c.0.s8 %v608
        %v610 = vlaneseq
        %v611 = vshrl.u32 %v610, 7
        %v612 = vsub.s32 %v609, %v611
        %v613 = vrot.slane %v605, %v612
        %v615 = vunpack.c.l.s4 1966171168
        %v616 = vunpack.c.0.s8 %v615
        %v617 = vlaneseq
        %v618 = vshrl.u32 %v617, 7
        %v619 = vsub.s32 %v616, %v618
        %v620 = vrot.slane %v606, %v619
        %v621 = vcombine.high %v613, %v613
        %v622 = vcombine.high %v620, %v620
        %v623 = vlaneseq
        %v624 = vshrl.u32 %v623, 7
        %v625 = vsub.s32 0, %v624
        %v626 = vrot.slane %v613, %v625
        %v627 = vlaneseq
        %v628 = vshrl.u32 %v627, 7
        %v629 = vsub.s32 0, %v628
        %v630 = vrot.slane %v620, %v629
        %v631 = vlaneseq
        %v632 = vshrl.u32 %v631, 7
        %v633 = vsub.s32 0, %v632
        %v634 = vrot.slane %v621, %v633
        %v635 = vlaneseq
        %v636 = vshrl.u32 %v635, 7
        %v637 = vsub.s32 0, %v636
        %v638 = vrot.slane %v622, %v637
        %v643 = vadd.f32 %v580, %v626
        %v644 = vadd.f32 %v585, %v630
        %v645 = vadd.f32 %v590, %v634
        %v646 = vadd.f32 %v595, %v638
        %v647 = vsel %vm500, %v643, 0.0
        %648 = vadd.xlane.f32.xlu0 %v647
        %v649 = vpop.xlane.xlu0 %648
        %v650 = vsel %vm500, %v644, 0.0
        %651 = vadd.xlane.f32.xlu0 %v650
        %v652 = vpop.xlane.xlu0 %651
        %v653 = vsel %vm500, %v645, 0.0
        %654 = vadd.xlane.f32.xlu0 %v653
        %v655 = vpop.xlane.xlu0 %654
        %v656 = vsel %vm500, %v646, 0.0
        %657 = vadd.xlane.f32.xlu0 %v656
        %v658 = vpop.xlane.xlu0 %657
        %v659 = vrcp.pop 32.0
        %v660 = vmul.f32 %v649, %v659
        %v661 = vmul.f32 %v652, %v659
        %v662 = vmul.f32 %v655, %v659
        %v663 = vmul.f32 %v658, %v659
        %v664 = vsub.f32 %v643, %v660
        %v665 = vsub.f32 %v644, %v661
        %v666 = vsub.f32 %v645, %v662
        %v667 = vsub.f32 %v646, %v663
        %v668 = vmul.f32 %v664, %v664
        %v669 = vmul.f32 %v665, %v665
        %v670 = vmul.f32 %v666, %v666
        %v671 = vmul.f32 %v667, %v667
        %v672 = vsel %vm500, %v668, 0.0
        %673 = vadd.xlane.f32.xlu0 %v672
        %v674 = vpop.xlane.xlu0 %673
        %v675 = vsel %vm500, %v669, 0.0
        %676 = vadd.xlane.f32.xlu0 %v675
        %v677 = vpop.xlane.xlu0 %676
        %v678 = vsel %vm500, %v670, 0.0
        %679 = vadd.xlane.f32.xlu0 %v678
        %v680 = vpop.xlane.xlu0 %679
        %v681 = vsel %vm500, %v671, 0.0
        %682 = vadd.xlane.f32.xlu0 %v681
        %v683 = vpop.xlane.xlu0 %682
        %v684 = vmul.f32 %v674, %v659
        %v685 = vmul.f32 %v677, %v659
        %v686 = vmul.f32 %v680, %v659
        %v687 = vmul.f32 %v683, %v659
        %v688 = vadd.f32 %v684, 1e-05
        %v689 = vadd.f32 %v685, 1e-05
        %v690 = vadd.f32 %v686, 1e-05
        %v691 = vadd.f32 %v687, 1e-05
        %v692 = vrsqrt.pop %v688
        %v693 = vrsqrt.pop %v689
        %v694 = vrsqrt.pop %v690
        %v695 = vrsqrt.pop %v691
        %v696 = vmul.f32 %v664, %v692
        %v697 = vmul.f32 %v665, %v693
        %v698 = vmul.f32 %v666, %v694
        %v699 = vmul.f32 %v667, %v695
        %v700 = vld [vmem:[%s5] sm:$0x1]
        %v702 = vlaneseq
        %v703 = vshrl.u32 %v702, 7
        %v704 = vsub.s32 0, %v703
        %v705 = vrot.slane %v700, %v704
        %v707 = vmul.f32 %v696, %v705
        %v708 = vmul.f32 %v697, %v705
        %v709 = vmul.f32 %v698, %v705
        %v710 = vmul.f32 %v699, %v705
        %v711 = vld [vmem:[%s6] sm:$0x1]
        %v713 = vlaneseq
        %v714 = vshrl.u32 %v713, 7
        %v715 = vsub.s32 0, %v714
        %v716 = vrot.slane %v711, %v715
        %v718 = vadd.f32 %v707, %v716
        %v719 = vadd.f32 %v708, %v716
        %v720 = vadd.f32 %v709, %v716
        %v721 = vadd.f32 %v710, %v716
        %vm722 = vcmp.ge.f32.partialorder %v718, 0.0
        %vm723 = vcmp.ge.f32.partialorder %v719, 0.0
        %vm724 = vcmp.ge.f32.partialorder %v720, 0.0
        %vm725 = vcmp.ge.f32.partialorder %v721, 0.0
        %v726 = vmul.f32 %v718, 0.01
        %v727 = vmul.f32 %v719, 0.01
        %v728 = vmul.f32 %v720, 0.01
        %v729 = vmul.f32 %v721, 0.01
        %v730 = vsel %vm722, %v718, %v726
        %v731 = vsel %vm723, %v719, %v727
        %v732 = vsel %vm724, %v720, %v728
        %v733 = vsel %vm725, %v721, %v729
        %v734 = vld [vmem:[%s7] sm:$0x1]
        %v736 = vlaneseq
        %v737 = vshrl.u32 %v736, 7
        %v738 = vsub.s32 0, %v737
        %v739 = vrot.slane %v734, %v738
        %v741 = vmul.f32 %v730, %v739
        %v742 = vmul.f32 %v731, %v739
        %v743 = vmul.f32 %v732, %v739
        %v744 = vmul.f32 %v733, %v739
        %v745 = vsel %vm500, %v741, 0.0
        %746 = vadd.xlane.f32.xlu0 %v745
        %v747 = vpop.xlane.xlu0 %746
        %v748 = vsel %vm500, %v742, 0.0
        %749 = vadd.xlane.f32.xlu0 %v748
        %v750 = vpop.xlane.xlu0 %749
        %v751 = vsel %vm500, %v743, 0.0
        %752 = vadd.xlane.f32.xlu0 %v751
        %v753 = vpop.xlane.xlu0 %752
        %v754 = vsel %vm500, %v744, 0.0
        %755 = vadd.xlane.f32.xlu0 %v754
        %v756 = vpop.xlane.xlu0 %755
        %v757 = vld [vmem:[#allocation2] sm:$0x1]
        %v759 = vlaneseq
        %v760 = vshrl.u32 %v759, 7
        %v761 = vsub.s32 0, %v760
        %v762 = vrot.slane %v757, %v761
        %763 = vset.pattern.permute.xlu0 0
        %764 = vperm.xlu0 %763, %v762
        %v765 = vpop.permute.xlu0 %764
        %v767 = vadd.f32 %v747, %v765
        %v768 = vadd.f32 %v750, %v765
        %v769 = vadd.f32 %v753, %v765
        %v770 = vadd.f32 %v756, %v765
        %v775 = vlaneseq
        %v776 = vand.u32 %v775, 127
        %v777 = vlaneseq
        %v778 = vshrl.u32 %v777, 7
        %v779 = vsub.s32 %v776, %v778
        %v780 = vrot.slane %v767, %v779
        %v781 = vlaneseq
        %v782 = vshrl.u32 %v781, 7
        %v783 = vsub.s32 %v776, %v782
        %v784 = vrot.slane %v768, %v783
        %v785 = vlaneseq
        %v786 = vshrl.u32 %v785, 7
        %v787 = vsub.s32 %v776, %v786
        %v788 = vrot.slane %v769, %v787
        %v789 = vlaneseq
        %v790 = vshrl.u32 %v789, 7
        %v791 = vsub.s32 %v776, %v790
        %v792 = vrot.slane %v770, %v791
        %vm793 = vcmask 1041409
        %v794 = vsel %vm793, %v784, %v780
        %vm795 = vcmask 1042434
        %v796 = vsel %vm795, %v788, %v794
        %vm797 = vcmask 1043459
        %v798 = vsel %vm797, %v792, %v796
        %vm800 = vcmask 60416
        %v801 = vsel %vm800, %v798, -inf
        %802 = vmax.xlane.f32.xlu0 %v801
        %v803 = vpop.xlane.xlu0 %802
        %v805 = vlaneseq
        %v806 = vshrl.u32 %v805, 7
        %v807 = vsub.s32 0, %v806
        %v808 = vrot.slane %v803, %v807
        %v809 = vlaneseq
        %v810 = vshrl.u32 %v809, 7
        %v811 = vsub.s32 1, %v810
        %v812 = vrot.slane %v803, %v811
        %v813 = vlaneseq
        %v814 = vshrl.u32 %v813, 7
        %v815 = vsub.s32 2, %v814
        %v816 = vrot.slane %v803, %v815
        %v817 = vlaneseq
        %v818 = vshrl.u32 %v817, 7
        %v819 = vsub.s32 3, %v818
        %v820 = vrot.slane %v803, %v819
        %v825 = vsub.f32 %v767, %v808
        %v826 = vsub.f32 %v768, %v812
        %v827 = vsub.f32 %v769, %v816
        %v828 = vsub.f32 %v770, %v820
        %v829 = vmul.f32 %v825, 1.442695
        %v830 = vpow.pop %v829
        %v831 = vmul.f32 %v826, 1.442695
        %v832 = vpow.pop %v831
        %v833 = vmul.f32 %v827, 1.442695
        %v834 = vpow.pop %v833
        %v835 = vmul.f32 %v828, 1.442695
        %v836 = vpow.pop %v835
        %841 = vset.pattern.permute.xlu0 0
        %842 = vperm.xlu0 %841, %v830
        %v843 = vpop.permute.xlu0 %842
        %844 = vset.pattern.permute.xlu0 0
        %845 = vperm.xlu0 %844, %v832
        %v846 = vpop.permute.xlu0 %845
        %847 = vset.pattern.permute.xlu0 0
        %848 = vperm.xlu0 %847, %v834
        %v849 = vpop.permute.xlu0 %848
        %850 = vset.pattern.permute.xlu0 0
        %851 = vperm.xlu0 %850, %v836
        %v852 = vpop.permute.xlu0 %851
        %v853 = vlaneseq
        %v854 = vshrl.u32 %v853, 7
        %v855 = vsub.s32 %v776, %v854
        %v856 = vrot.slane %v843, %v855
        %v857 = vlaneseq
        %v858 = vshrl.u32 %v857, 7
        %v859 = vsub.s32 %v776, %v858
        %v860 = vrot.slane %v846, %v859
        %v861 = vlaneseq
        %v862 = vshrl.u32 %v861, 7
        %v863 = vsub.s32 %v776, %v862
        %v864 = vrot.slane %v849, %v863
        %v865 = vlaneseq
        %v866 = vshrl.u32 %v865, 7
        %v867 = vsub.s32 %v776, %v866
        %v868 = vrot.slane %v852, %v867
        %v869 = vsel %vm793, %v860, %v856
        %v870 = vsel %vm795, %v864, %v869
        %v871 = vsel %vm797, %v868, %v870
        %v873 = vsel %vm800, %v871, 0.0
        %874 = vadd.xlane.f32.xlu0 %v873
        %v875 = vpop.xlane.xlu0 %874
        %v876 = vrcp.pop %v875
        %v878 = vlaneseq
        %v879 = vshrl.u32 %v878, 7
        %v880 = vsub.s32 0, %v879
        %v881 = vrot.slane %v876, %v880
        %v882 = vlaneseq
        %v883 = vshrl.u32 %v882, 7
        %v884 = vsub.s32 1, %v883
        %v885 = vrot.slane %v876, %v884
        %v886 = vlaneseq
        %v887 = vshrl.u32 %v886, 7
        %v888 = vsub.s32 2, %v887
        %v889 = vrot.slane %v876, %v888
        %v890 = vlaneseq
        %v891 = vshrl.u32 %v890, 7
        %v892 = vsub.s32 3, %v891
        %v893 = vrot.slane %v876, %v892
        %v898 = vmul.f32 %v830, %v881
        %v899 = vmul.f32 %v832, %v885
        %v900 = vmul.f32 %v834, %v889
        %v901 = vmul.f32 %v836, %v893
        %903 = vset.pattern.permute.xlu0 0
        %904 = vperm.xlu0 %903, %v898
        %v905 = vpop.permute.xlu0 %904
        %908 = vset.pattern.permute.xlu0 0
        %909 = vperm.xlu0 %908, %v899
        %v910 = vpop.permute.xlu0 %909
        %913 = vset.pattern.permute.xlu0 0
        %914 = vperm.xlu0 %913, %v900
        %v915 = vpop.permute.xlu0 %914
        %918 = vset.pattern.permute.xlu0 0
        %919 = vperm.xlu0 %918, %v901
        %v920 = vpop.permute.xlu0 %919
        %v922 = vmul.f32 %v905, %v484
        %v923 = vmul.f32 %v910, %v485
        %v924 = vmul.f32 %v915, %v486
        %v925 = vmul.f32 %v920, %v487
        %vm926 = vcmask 130048
        %v927 = vsel %vm926, %v922, 0.0
        %v928 = vrot.slane %v927, 4
        %v929 = vadd.f32 %v927, %v928
        %v930 = vrot.slane %v929, 2
        %v931 = vadd.f32 %v929, %v930
        %v932 = vrot.slane %v931, 1
        %v933 = vadd.f32 %v931, %v932
        %v934 = vsel %vm926, %v923, 0.0
        %v935 = vrot.slane %v934, 4
        %v936 = vadd.f32 %v934, %v935
        %v937 = vrot.slane %v936, 2
        %v938 = vadd.f32 %v936, %v937
        %v939 = vrot.slane %v938, 1
        %v940 = vadd.f32 %v938, %v939
        %v941 = vsel %vm926, %v924, 0.0
        %v942 = vrot.slane %v941, 4
        %v943 = vadd.f32 %v941, %v942
        %v944 = vrot.slane %v943, 2
        %v945 = vadd.f32 %v943, %v944
        %v946 = vrot.slane %v945, 1
        %v947 = vadd.f32 %v945, %v946
        %v948 = vsel %vm926, %v925, 0.0
        %v949 = vrot.slane %v948, 4
        %v950 = vadd.f32 %v948, %v949
        %v951 = vrot.slane %v950, 2
        %v952 = vadd.f32 %v950, %v951
        %v953 = vrot.slane %v952, 1
        %v954 = vadd.f32 %v952, %v953
        %v959 = vsel %vm793, %v940, %v933
        %v960 = vsel %vm795, %v947, %v959
        %v961 = vsel %vm797, %v954, %v960
        %vm963 = vcmask 125952
        %964 = vst.msk [vmem:[%s472] sm:$0xf] %vm963, %v961
        %v965 = vlaneseq
        %v966 = vshrl.u32 %v965, 7
        %v967 = vsub.s32 %v776, %v966
        %v968 = vrot.slane %v905, %v967
        %v969 = vlaneseq
        %v970 = vshrl.u32 %v969, 7
        %v971 = vsub.s32 %v776, %v970
        %v972 = vrot.slane %v910, %v971
        %v973 = vlaneseq
        %v974 = vshrl.u32 %v973, 7
        %v975 = vsub.s32 %v776, %v974
        %v976 = vrot.slane %v915, %v975
        %v977 = vlaneseq
        %v978 = vshrl.u32 %v977, 7
        %v979 = vsub.s32 %v776, %v978
        %v980 = vrot.slane %v920, %v979
        %v981 = vsel %vm793, %v972, %v968
        %v982 = vsel %vm795, %v976, %v981
        %v983 = vsel %vm797, %v980, %v982
        %985 = vst.msk [vmem:[%s479] sm:$0xf] %vm800, %v983
        %s986 = sand.u32 %s249, 1
        %s987 = scalar_lea.sflag [#allocation5], %s986
        %s988 = sand.u32 %s249, 1
        %s989 = smul.addr %s988, 4
        %s990 = scalar_lea.vmem [#allocation11], %s989
        %s991 = sand.u32 %s275, 1
        %s992 = scalar_lea.sflag [#allocation13], %s991
        %s993 = sand.u32 %s275, 1
        %s994 = smul.addr %s993, 4
        %s995 = scalar_lea.vmem [#allocation12], %s994
        // Predicated region
        $region73: #{tpu_custom_call.1} parent=55 // pred_check
          %p996 = pneg %p259
        $region74: #{tpu_custom_call.1} parent=55 // pred_check_branch
          %998 = sbr.rel (%p996) target = $region76
        $region75: #{tpu_custom_call.1} parent=55 // pred_region
          %s1000 = ssub.s32 64, 64
          %1001 = vsyncadd %s987, %s1000
          %s1002 = smul.addr %s37, 64
          %s1003 = scalar_lea.hbm %s9, %s1002
          %s1005 = sshll.u32 %s990, 4
          %s1006 = int_to_ptr.vmem [resolvable:$true] %s1005
          %1008 = dma.vmem_to_hbm [thread:$0]  %s1006, 64, %s1003, %s987
        $region76: #{tpu_custom_call.1} parent=55 // pred_fallthru
          _
        // Predicated region
        $region77: #{tpu_custom_call.1} parent=55 // pred_check
          %p1009 = pneg %p285
        $region78: #{tpu_custom_call.1} parent=55 // pred_check_branch
          %1011 = sbr.rel (%p1009) target = $region80
        $region79: #{tpu_custom_call.1} parent=55 // pred_region
          %s1013 = ssub.s32 64, 64
          %1014 = vsyncadd %s992, %s1013
          %s1015 = smul.addr %s37, 64
          %s1016 = scalar_lea.hbm %s10, %s1015
          %s1018 = sshll.u32 %s995, 4
          %s1019 = int_to_ptr.vmem [resolvable:$true] %s1018
          %1021 = dma.vmem_to_hbm [thread:$0]  %s1019, 64, %s1016, %s992
        $region80: #{tpu_custom_call.1} parent=55 // pred_fallthru
          _
      $region56: #{tpu_custom_call.1} parent=5 // pred_fallthru
        _
      %p1022 = scmp.le.s32.totalorder 2, %s32
      // Predicated region
      $region81: #{tpu_custom_call.1} parent=5 // pred_check
        %p1023 = pneg %p1022
      $region82: #{tpu_custom_call.1} parent=5 // pred_check_branch
        %1025 = sbr.rel (%p1023) target = $region84
      $region83: #{tpu_custom_call.1} parent=5 // pred_region
        %s1026 = ssub.s32 %s32, 2
        // Predicated region
        $region85: #{tpu_custom_call.1} parent=83 // pred_check
          %p1027 = pneg %p265
        $region86: #{tpu_custom_call.1} parent=83 // pred_check_branch
          %1029 = sbr.rel (%p1027) target = $region88
        $region87: #{tpu_custom_call.1} parent=83 // pred_region
          %s1030 = sand.u32 %s250, 1
          %s1031 = scalar_lea.sflag [#allocation5], %s1030
          %s1032 = sand.u32 %s250, 1
          %s1033 = smul.addr %s1032, 4
          %s1034 = scalar_lea.vmem [#allocation11], %s1033
          %1035 = dma.done %s1031, 64
        $region88: #{tpu_custom_call.1} parent=83 // pred_fallthru
          _
        // Predicated region
        $region89: #{tpu_custom_call.1} parent=83 // pred_check
          %p1036 = pneg %p291
        $region90: #{tpu_custom_call.1} parent=83 // pred_check_branch
          %1038 = sbr.rel (%p1036) target = $region92
        $region91: #{tpu_custom_call.1} parent=83 // pred_region
          %s1039 = sand.u32 %s276, 1
          %s1040 = scalar_lea.sflag [#allocation13], %s1039
          %s1041 = sand.u32 %s276, 1
          %s1042 = smul.addr %s1041, 4
          %s1043 = scalar_lea.vmem [#allocation12], %s1042
          %1044 = dma.done %s1040, 64
        $region92: #{tpu_custom_call.1} parent=83 // pred_fallthru
          _
      $region84: #{tpu_custom_call.1} parent=5 // pred_fallthru
        _
    $region6: #{tpu_custom_call.1} parent=1 // loop_footer
      %s36 = sadd.s32 1, %s32
    $region7: #{tpu_custom_call.1} parent=1 // loop_footer_branch
      %31 = sbr.rel target = $region3
    $region8: #{tpu_custom_call.1} parent=1 // loop_exit
      _
    %1045 = vsyncpa [#allocation4], 1
    %s1046 = scalar_lea.sflag [#allocation4], 1
    %1047 = vsyncpa %s1046, 1
    %1048 = vsyncpa [#allocation7], 1
    %s1049 = scalar_lea.sflag [#allocation7], 1
    %1050 = vsyncpa %s1049, 1
    %1051 = vsyncpa [#allocation10], 1
    %1052 = vsyncpa [#allocation5], 1
    %s1053 = scalar_lea.sflag [#allocation5], 1
    %1054 = vsyncpa %s1053, 1
    %1055 = vsyncpa [#allocation13], 1
    %s1056 = scalar_lea.sflag [#allocation13], 1
    %1057 = vsyncpa %s1056, 1

</llo_original>
